<compile_context>
chip_gen: v6e
topology: v6e:2x2x1
jax: 0.10.0
libtpu: 0.0.40
codegen_flags: <defaults>
</compile_context>

<pallas_src>
import functools

import jax
import jax.numpy as jnp
import numpy as np
from jax.experimental import pallas as pl
from jax.experimental.pallas import tpu as pltpu


# ----------------------------------------------------------------------------
# Kernel
# ----------------------------------------------------------------------------
def _sgns_partial_kernel(in_ref, ctx_ref, out_ref, *, n_pos, batch, tile_b):
    """Per-batch-tile partial sum of log-sigmoid scores.

    in_ref  : (tile_b, E)       center-word embeddings
    ctx_ref : (tile_b, C, E)    concatenated [pos | neg] context embeddings
    out_ref : (1, 1)            partial sum for this tile
    """
    i = pl.program_id(0)

    in_e = in_ref[...]                                   # (tile_b, E)  f32
    ctx = ctx_ref[...]                                   # (tile_b, C, E)

    # score[b, c] = sum_e ctx[b, c, e] * in_e[b, e]
    scores = jnp.sum(ctx * in_e[:, None, :], axis=-1)    # (tile_b, C)

    # +score for the first n_pos columns (positives), -score for negatives.
    col = jax.lax.broadcasted_iota(jnp.int32, scores.shape, 1)
    signed = jnp.where(col < n_pos, scores, -scores)

    # Numerically stable log(sigmoid(x)) = min(x, 0) - log1p(exp(-|x|))
    ls = jnp.minimum(signed, 0.0) - jnp.log1p(jnp.exp(-jnp.abs(signed)))

    # Mask out padded batch rows so they do not bias the loss.
    row = jax.lax.broadcasted_iota(jnp.int32, scores.shape, 0) + i * tile_b
    ls = jnp.where(row < batch, ls, 0.0)

    row_sum = jnp.sum(ls, axis=1, keepdims=True)         # (tile_b, 1)
    out_ref[...] = jnp.sum(row_sum, axis=0, keepdims=True)  # (1, 1)


def _choose_tile_b(batch, n_ctx, emb, itemsize=4, vmem_budget=12 << 20):
    """Pick a batch tile that keeps double-buffered inputs well under VMEM."""
    bytes_per_row = (1 + n_ctx) * emb * itemsize
    tile = vmem_budget // (2 * bytes_per_row)   # x2 for double buffering
    tile = (tile // 8) * 8
    tile = max(8, min(512, tile))
    b_pad8 = -(-batch // 8) * 8                 # don't over-pad tiny batches
    return min(tile, b_pad8)


def sgns_loss_pallas(in_emb, ctx_emb, n_pos):
    """in_emb: (B, E) f32; ctx_emb: (B, P+N, E) f32 (pos then neg)."""
    B, E = in_emb.shape
    _, C, _ = ctx_emb.shape

    tile_b = _choose_tile_b(B, C, E)
    n_blocks = -(-B // tile_b)
    b_pad = n_blocks * tile_b
    if b_pad != B:
        in_emb = jnp.pad(in_emb, ((0, b_pad - B), (0, 0)))
        ctx_emb = jnp.pad(ctx_emb, ((0, b_pad - B), (0, 0), (0, 0)))

    kernel = functools.partial(
        _sgns_partial_kernel, n_pos=n_pos, batch=B, tile_b=tile_b)

    partials = pl.pallas_call(
        kernel,
        out_shape=jax.ShapeDtypeStruct((n_blocks, 1), jnp.float32),
        grid_spec=pltpu.PrefetchScalarGridSpec(
            num_scalar_prefetch=0,
            grid=(n_blocks,),
            in_specs=[
                pl.BlockSpec((tile_b, E), lambda i: (i, 0)),
                pl.BlockSpec((tile_b, C, E), lambda i: (i, 0, 0)),
            ],
            out_specs=pl.BlockSpec((1, 1), lambda i: (i, 0)),
        ),
        compiler_params=pltpu.CompilerParams(
            dimension_semantics=("parallel",),
            vmem_limit_bytes=32 << 20,
        ),
    )(in_emb, ctx_emb)

    # Final tiny reduction + mean over the GLOBAL batch size (plain JAX glue).
    return -jnp.sum(partials) / float(B)


# ----------------------------------------------------------------------------
# Module
# ----------------------------------------------------------------------------
class Net:
    """JAX/Pallas port of the PyTorch word2vec SGNS `Net`."""

    def __init__(self, vocab_size, emb_size, key):
        self.vocab_size = vocab_size
        self.emb_size = emb_size
        initrange = 0.5 / emb_size
        k_in, k_out = jax.random.split(key)
        self.in_embed = jax.random.uniform(
            k_in, (vocab_size, emb_size), jnp.float32, -initrange, initrange)
        self.out_embed = jax.random.uniform(
            k_out, (vocab_size, emb_size), jnp.float32, -initrange, initrange)

    def forward(self, center_words, pos_words, neg_words):
        n_pos = pos_words.shape[1]
        # One fused gather for pos+neg contexts (single HBM tensor feeds the
        # kernel instead of two).
        ctx_words = jnp.concatenate([pos_words, neg_words], axis=1)      # (B, P+N)
        input_embedding = jnp.take(self.in_embed, center_words, axis=0)  # (B, E)
        ctx_embedding = jnp.take(self.out_embed, ctx_words, axis=0)      # (B, P+N, E)
        # TODO(synk): fuse the embedding gather into the kernel via scalar
        # prefetch + per-row DMA; skipped here because with small E each row
        # DMA is only E*4 bytes and becomes descriptor-bound.
        return sgns_loss_pallas(input_embedding, ctx_embedding, n_pos)

    def input_embeddings(self):
        return np.asarray(self.in_embed)


# ----------------------------------------------------------------------------
# Reference + self-test
# ----------------------------------------------------------------------------
def _reference_loss(net, center_words, pos_words, neg_words):
    """Pure-JAX reference matching the PyTorch forward exactly."""
    in_e = jnp.take(net.in_embed, center_words, axis=0)
    pos_e = jnp.take(net.out_embed, pos_words, axis=0)
    neg_e = jnp.take(net.out_embed, neg_words, axis=0)
    log_pos = jnp.einsum('bpe,be->bp', pos_e, in_e)
    log_neg = jnp.einsum('bne,be->bn', neg_e, -in_e)
    ls = lambda x: jnp.minimum(x, 0.0) - jnp.log1p(jnp.exp(-jnp.abs(x)))
    loss = jnp.sum(ls(log_pos), axis=1) + jnp.sum(ls(log_neg), axis=1)
    return -jnp.mean(loss)


if __name__ == "__main__":
    vocab_size = 50
    emb_size = 32
    batch = 2
    n_pos = 4
    n_neg = 8

    key = jax.random.PRNGKey(0)
    k_params, k_c, k_p, k_n = jax.random.split(key, 4)

    net = Net(vocab_size, emb_size, k_params)

    center_words = jax.random.randint(k_c, (batch,), 0, vocab_size, jnp.int32)
    pos_words = jax.random.randint(k_p, (batch, n_pos), 0, vocab_size, jnp.int32)
    neg_words = jax.random.randint(k_n, (batch, n_neg), 0, vocab_size, jnp.int32)

    loss = net.forward(center_words, pos_words, neg_words)
    loss = jax.block_until_ready(loss)

    ref = jax.block_until_ready(
        _reference_loss(net, center_words, pos_words, neg_words))
    np.testing.assert_allclose(np.asarray(loss), np.asarray(ref),
                               rtol=1e-5, atol=1e-6)

    print("KERNEL_OK")
</pallas_src>

<mosaic_0001>
module attributes {stable_mosaic.version = 11 : i64} {
  func.func @_sgns_partial_kernel(%arg0: i32, %arg1: memref<8x32xf32, #tpu.memory_space<vmem>>, %arg2: memref<8x12x32xf32, #tpu.memory_space<vmem>>, %arg3: memref<1x1xf32, #tpu.memory_space<vmem>>) attributes {dimension_semantics = [#tpu.dimension_semantics<parallel>], iteration_bounds = array<i64: 1>, scalar_prefetch = 0 : i64, scratch_operands = 0 : i64, tpu.core_type = #tpu.core_type<tc>, window_params = [{transform_indices = @transform_0, window_bounds = array<i64: 8, 32>}, {transform_indices = @transform_1, window_bounds = array<i64: 8, 12, 32>}, {transform_indices = @transform_2, window_bounds = array<i64: 1, 1>}]} {
    %c0 = arith.constant 0 : index
    %c0_0 = arith.constant 0 : index
    %0 = vector.load %arg1[%c0, %c0_0] : memref<8x32xf32, #tpu.memory_space<vmem>>, vector<8x32xf32>
    %c0_1 = arith.constant 0 : index
    %c0_2 = arith.constant 0 : index
    %c0_3 = arith.constant 0 : index
    %1 = vector.load %arg2[%c0_1, %c0_2, %c0_3] : memref<8x12x32xf32, #tpu.memory_space<vmem>>, vector<8x12x32xf32>
    %2 = vector.shape_cast %0 : vector<8x32xf32> to vector<8x1x32xf32>
    %3 = vector.broadcast %2 : vector<8x1x32xf32> to vector<8x12x32xf32>
    %4 = arith.mulf %1, %3 : vector<8x12x32xf32>
    %cst = arith.constant dense<0.000000e+00> : vector<8x12xf32>
    %5 = vector.multi_reduction <add>, %4, %cst [2] : vector<8x12x32xf32> to vector<8x12xf32>
    %6 = tpu.iota {dimensions = array<i32: 1>} : vector<8x12xi32>
    %c4_i32 = arith.constant 4 : i32
    %7 = vector.broadcast %c4_i32 : i32 to vector<8x12xi32>
    %8 = arith.cmpi slt, %6, %7 : vector<8x12xi32>
    %cst_4 = arith.constant 0.000000e+00 : f32
    %9 = vector.broadcast %cst_4 : f32 to vector<8x12xf32>
    %10 = arith.subf %9, %5 : vector<8x12xf32>
    %11 = arith.select %8, %5, %10 : vector<8x12xi1>, vector<8x12xf32>
    %cst_5 = arith.constant 0.000000e+00 : f32
    %12 = vector.broadcast %cst_5 : f32 to vector<8x12xf32>
    %13 = arith.minimumf %11, %12 : vector<8x12xf32>
    %14 = math.absf %11 : vector<8x12xf32>
    %cst_6 = arith.constant 0.000000e+00 : f32
    %15 = vector.broadcast %cst_6 : f32 to vector<8x12xf32>
    %16 = arith.subf %15, %14 : vector<8x12xf32>
    %17 = math.exp %16 : vector<8x12xf32>
    %18 = math.log1p %17 : vector<8x12xf32>
    %19 = arith.subf %13, %18 : vector<8x12xf32>
    %20 = tpu.iota {dimensions = array<i32: 0>} : vector<8x12xi32>
    %c8_i32 = arith.constant 8 : i32
    %21 = arith.muli %arg0, %c8_i32 : i32
    %22 = vector.broadcast %21 : i32 to vector<8x12xi32>
    %23 = arith.addi %20, %22 : vector<8x12xi32>
    %c2_i32 = arith.constant 2 : i32
    %24 = vector.broadcast %c2_i32 : i32 to vector<8x12xi32>
    %25 = arith.cmpi slt, %23, %24 : vector<8x12xi32>
    %cst_7 = arith.constant 0.000000e+00 : f32
    %26 = vector.broadcast %cst_7 : f32 to vector<8x12xf32>
    %27 = arith.select %25, %19, %26 : vector<8x12xi1>, vector<8x12xf32>
    %cst_8 = arith.constant dense<0.000000e+00> : vector<8xf32>
    %28 = vector.multi_reduction <add>, %27, %cst_8 [1] : vector<8x12xf32> to vector<8xf32>
    %29 = vector.shape_cast %28 : vector<8xf32> to vector<8x1xf32>
    %cst_9 = arith.constant dense<0.000000e+00> : vector<1xf32>
    %30 = vector.multi_reduction <add>, %29, %cst_9 [0] : vector<8x1xf32> to vector<1xf32>
    %31 = vector.shape_cast %30 : vector<1xf32> to vector<1x1xf32>
    %c0_10 = arith.constant 0 : index
    %c0_11 = arith.constant 0 : index
    %32 = vector.load %arg3[%c0_10, %c0_11] : memref<1x1xf32, #tpu.memory_space<vmem>>, vector<1x1xf32>
    tpu.vector_store %arg3[%c0_10, %c0_11], %31 {strides = array<i32>} : memref<1x1xf32, #tpu.memory_space<vmem>>, vector<1x1xf32>,
    return
  }
  func.func @transform_0(%arg0: i32) -> (i32, i32) {
    %c0_i32 = arith.constant 0 : i32
    %c0_i32_0 = arith.constant 0 : i32
    return %arg0, %c0_i32 : i32, i32
  }
  func.func @transform_1(%arg0: i32) -> (i32, i32, i32) {
    %c0_i32 = arith.constant 0 : i32
    %c0_i32_0 = arith.constant 0 : i32
    %c0_i32_1 = arith.constant 0 : i32
    return %arg0, %c0_i32, %c0_i32_0 : i32, i32, i32
  }
  func.func @transform_2(%arg0: i32) -> (i32, i32) {
    %c0_i32 = arith.constant 0 : i32
    %c0_i32_0 = arith.constant 0 : i32
    return %arg0, %c0_i32 : i32, i32
  }
}

</mosaic_0001>

<llo_original>
// kernel: tpu_custom_call.1
$region0: #{tpu_custom_call.1}
  #allocation0 [shape = 'u32[]', space=smem, size = 0x4, offset = 0x4, fixed_abs, tag = 'smem constant byte address 0x4 - core index']
  #allocation1 [shape = 'u32[144,128]{1,0:T(1,128)}', space=vmem, size = 0x12000, scoped, tag = 'internal scratch']
  %s0 = inlined_call_operand.vmem [shape: f32[8,32], index: 0, kind: input, shape index: {}]
  %s1 = inlined_call_operand.vmem [shape: f32[8,12,32], index: 1, kind: input, shape index: {}]
  %s2 = inlined_call_operand.hbm [shape: f32[1,1], index: 2, kind: output, shape index: {}]
  %s3 = sld [smem:[#allocation0]]
  $region18: #{tpu_custom_call.1} parent=0
    _
  %s5 = ssub.s32 1, %s3
  %s6 = scalar_select 0, %s5, %s3
  $region1: #{tpu_custom_call.1} parent=0
    #allocation2 [shape = 'u8[512]{0}', space=vmem, size = 0x400, scoped, tag = 'output window, operand 0, single buffered']
    #allocation3 [shape = 's32[1]{0}', space=sflag, size = 0x4, scoped, tag = 'scoped memory for tpu_custom_call.1']
    %7 = vsyncpa [#allocation3], 0
    // Predicated region
    $region2: #{tpu_custom_call.1} parent=1 // pred_check
      _
    $region3: #{tpu_custom_call.1} parent=1 // pred_check_branch
      %9 = sbr.rel (0) target = $region5
    $region4: #{tpu_custom_call.1} parent=1 // pred_region
      _
    $region5: #{tpu_custom_call.1} parent=1 // pred_fallthru
      _
    // Predicated region
    $region6: #{tpu_custom_call.1} parent=1 // pred_check
      _
    $region7: #{tpu_custom_call.1} parent=1 // pred_check_branch
      %11 = sbr.rel (0) target = $region9
    $region8: #{tpu_custom_call.1} parent=1 // pred_region
      _
    $region9: #{tpu_custom_call.1} parent=1 // pred_fallthru
      _
    %v12 = vld [vmem:[%s0] sm:$0xff]
    %v13 = vld [vmem:[%s1] sm:$0xff]
    %v14 = vld [vmem:[%s1 + $0x8] sm:$0xf]
    %v15 = vld [vmem:[%s1 + $0x10] sm:$0xff]
    %v16 = vld [vmem:[%s1 + $0x18] sm:$0xf]
    %v17 = vld [vmem:[%s1 + $0x20] sm:$0xff]
    %v18 = vld [vmem:[%s1 + $0x28] sm:$0xf]
    %v19 = vld [vmem:[%s1 + $0x30] sm:$0xff]
    %v20 = vld [vmem:[%s1 + $0x38] sm:$0xf]
    %v21 = vld [vmem:[%s1 + $0x40] sm:$0xff]
    %v22 = vld [vmem:[%s1 + $0x48] sm:$0xf]
    %v23 = vld [vmem:[%s1 + $0x50] sm:$0xff]
    %v24 = vld [vmem:[%s1 + $0x58] sm:$0xf]
    %v25 = vld [vmem:[%s1 + $0x60] sm:$0xff]
    %v26 = vld [vmem:[%s1 + $0x68] sm:$0xf]
    %v27 = vld [vmem:[%s1 + $0x70] sm:$0xff]
    %v28 = vld [vmem:[%s1 + $0x78] sm:$0xf]
    %v30 = vcombine.high %v12, %v12
    %v32 = vunpack.c.l.s4 1966171168
    %v33 = vunpack.c.0.s8 %v32
    %v34 = vlaneseq
    %v35 = vshrl.u32 %v34, 7
    %v36 = vsub.s32 %v33, %v35
    %v37 = vrot.slane %v12, %v36
    %v39 = vunpack.c.l.s4 1966171168
    %v40 = vunpack.c.0.s8 %v39
    %v41 = vlaneseq
    %v42 = vshrl.u32 %v41, 7
    %v43 = vsub.s32 %v40, %v42
    %v44 = vrot.slane %v30, %v43
    %v45 = vcombine.high %v37, %v37
    %v46 = vcombine.high %v44, %v44
    %v48 = vunpack.c.l.s4 1966171168
    %v49 = vunpack.c.0.s8 %v48
    %v50 = vlaneseq
    %v51 = vshrl.u32 %v50, 7
    %v52 = vsub.s32 %v49, %v51
    %v53 = vrot.slane %v37, %v52
    %v55 = vunpack.c.l.s4 1966171168
    %v56 = vunpack.c.0.s8 %v55
    %v57 = vlaneseq
    %v58 = vshrl.u32 %v57, 7
    %v59 = vsub.s32 %v56, %v58
    %v60 = vrot.slane %v44, %v59
    %v62 = vunpack.c.l.s4 1966171168
    %v63 = vunpack.c.0.s8 %v62
    %v64 = vlaneseq
    %v65 = vshrl.u32 %v64, 7
    %v66 = vsub.s32 %v63, %v65
    %v67 = vrot.slane %v45, %v66
    %v69 = vunpack.c.l.s4 1966171168
    %v70 = vunpack.c.0.s8 %v69
    %v71 = vlaneseq
    %v72 = vshrl.u32 %v71, 7
    %v73 = vsub.s32 %v70, %v72
    %v74 = vrot.slane %v46, %v73
    %v75 = vcombine.high %v53, %v53
    %v76 = vcombine.high %v60, %v60
    %v77 = vcombine.high %v67, %v67
    %v78 = vcombine.high %v74, %v74
    %v79 = vlaneseq
    %v80 = vshrl.u32 %v79, 7
    %v81 = vsub.s32 0, %v80
    %v82 = vrot.slane %v53, %v81
    %v83 = vlaneseq
    %v84 = vshrl.u32 %v83, 7
    %v85 = vsub.s32 0, %v84
    %v86 = vrot.slane %v67, %v85
    %v87 = vlaneseq
    %v88 = vshrl.u32 %v87, 7
    %v89 = vsub.s32 0, %v88
    %v90 = vrot.slane %v75, %v89
    %v91 = vlaneseq
    %v92 = vshrl.u32 %v91, 7
    %v93 = vsub.s32 0, %v92
    %v94 = vrot.slane %v77, %v93
    %v95 = vlaneseq
    %v96 = vshrl.u32 %v95, 7
    %v97 = vsub.s32 0, %v96
    %v98 = vrot.slane %v60, %v97
    %v99 = vlaneseq
    %v100 = vshrl.u32 %v99, 7
    %v101 = vsub.s32 0, %v100
    %v102 = vrot.slane %v74, %v101
    %v103 = vlaneseq
    %v104 = vshrl.u32 %v103, 7
    %v105 = vsub.s32 0, %v104
    %v106 = vrot.slane %v76, %v105
    %v107 = vlaneseq
    %v108 = vshrl.u32 %v107, 7
    %v109 = vsub.s32 0, %v108
    %v110 = vrot.slane %v78, %v109
    %v119 = vmul.f32 %v13, %v82
    %v120 = vmul.f32 %v14, %v82
    %v121 = vmul.f32 %v15, %v86
    %v122 = vmul.f32 %v16, %v86
    %v123 = vmul.f32 %v17, %v90
    %v124 = vmul.f32 %v18, %v90
    %v125 = vmul.f32 %v19, %v94
    %v126 = vmul.f32 %v20, %v94
    %v127 = vmul.f32 %v21, %v98
    %v128 = vmul.f32 %v22, %v98
    %v129 = vmul.f32 %v23, %v102
    %v130 = vmul.f32 %v24, %v102
    %v131 = vmul.f32 %v25, %v106
    %v132 = vmul.f32 %v26, %v106
    %v133 = vmul.f32 %v27, %v110
    %v134 = vmul.f32 %v28, %v110
    %vm135 = vcmask 261120
    %v136 = vsel %vm135, %v119, 0.0
    %137 = vadd.xlane.f32.xlu0 %v136
    %v138 = vpop.xlane.xlu0 %137
    %vm139 = vcmask 257024
    %v140 = vsel %vm139, %v120, 0.0
    %141 = vadd.xlane.f32.xlu0 %v140
    %v142 = vpop.xlane.xlu0 %141
    %v143 = vsel %vm135, %v121, 0.0
    %144 = vadd.xlane.f32.xlu0 %v143
    %v145 = vpop.xlane.xlu0 %144
    %v146 = vsel %vm139, %v122, 0.0
    %147 = vadd.xlane.f32.xlu0 %v146
    %v148 = vpop.xlane.xlu0 %147
    %v149 = vsel %vm135, %v123, 0.0
    %150 = vadd.xlane.f32.xlu0 %v149
    %v151 = vpop.xlane.xlu0 %150
    %v152 = vsel %vm139, %v124, 0.0
    %153 = vadd.xlane.f32.xlu0 %v152
    %v154 = vpop.xlane.xlu0 %153
    %v155 = vsel %vm135, %v125, 0.0
    %156 = vadd.xlane.f32.xlu0 %v155
    %v157 = vpop.xlane.xlu0 %156
    %v158 = vsel %vm139, %v126, 0.0
    %159 = vadd.xlane.f32.xlu0 %v158
    %v160 = vpop.xlane.xlu0 %159
    %v161 = vsel %vm135, %v127, 0.0
    %162 = vadd.xlane.f32.xlu0 %v161
    %v163 = vpop.xlane.xlu0 %162
    %v164 = vsel %vm139, %v128, 0.0
    %165 = vadd.xlane.f32.xlu0 %v164
    %v166 = vpop.xlane.xlu0 %165
    %v167 = vsel %vm135, %v129, 0.0
    %168 = vadd.xlane.f32.xlu0 %v167
    %v169 = vpop.xlane.xlu0 %168
    %v170 = vsel %vm139, %v130, 0.0
    %171 = vadd.xlane.f32.xlu0 %v170
    %v172 = vpop.xlane.xlu0 %171
    %v173 = vsel %vm135, %v131, 0.0
    %174 = vadd.xlane.f32.xlu0 %v173
    %v175 = vpop.xlane.xlu0 %174
    %v176 = vsel %vm139, %v132, 0.0
    %177 = vadd.xlane.f32.xlu0 %v176
    %v178 = vpop.xlane.xlu0 %177
    %v179 = vsel %vm135, %v133, 0.0
    %180 = vadd.xlane.f32.xlu0 %v179
    %v181 = vpop.xlane.xlu0 %180
    %v182 = vsel %vm139, %v134, 0.0
    %183 = vadd.xlane.f32.xlu0 %v182
    %v184 = vpop.xlane.xlu0 %183
    %v185 = vlaneseq
    %v186 = vand.u32 %v185, 127
    %vm187 = vcmp.lt.s32.totalorder %v186, 4
    %v188 = vsub.f32 0.0, %v138
    %v189 = vsub.f32 0.0, %v142
    %v190 = vsub.f32 0.0, %v145
    %v191 = vsub.f32 0.0, %v148
    %v192 = vsub.f32 0.0, %v151
    %v193 = vsub.f32 0.0, %v154
    %v194 = vsub.f32 0.0, %v157
    %v195 = vsub.f32 0.0, %v160
    %v196 = vsub.f32 0.0, %v163
    %v197 = vsub.f32 0.0, %v166
    %v198 = vsub.f32 0.0, %v169
    %v199 = vsub.f32 0.0, %v172
    %v200 = vsub.f32 0.0, %v175
    %v201 = vsub.f32 0.0, %v178
    %v202 = vsub.f32 0.0, %v181
    %v203 = vsub.f32 0.0, %v184
    %v220 = vlaneseq
    %v221 = vshrl.u32 %v220, 7
    %v222 = vsub.s32 %v186, %v221
    %v223 = vrot.slane %v138, %v222
    %v224 = vadd.s32 %v186, 4294967288
    %v225 = vlaneseq
    %v226 = vshrl.u32 %v225, 7
    %v227 = vsub.s32 %v224, %v226
    %v228 = vrot.slane %v142, %v227
    %vm229 = vcmask 130112
    %v230 = vsel %vm229, %v228, %v223
    %v231 = vlaneseq
    %v232 = vshrl.u32 %v231, 7
    %v233 = vsub.s32 %v186, %v232
    %v234 = vrot.slane %v145, %v233
    %v235 = vlaneseq
    %v236 = vshrl.u32 %v235, 7
    %v237 = vsub.s32 %v224, %v236
    %v238 = vrot.slane %v148, %v237
    %v239 = vsel %vm229, %v238, %v234
    %v240 = vlaneseq
    %v241 = vshrl.u32 %v240, 7
    %v242 = vsub.s32 %v186, %v241
    %v243 = vrot.slane %v151, %v242
    %v244 = vlaneseq
    %v245 = vshrl.u32 %v244, 7
    %v246 = vsub.s32 %v224, %v245
    %v247 = vrot.slane %v154, %v246
    %v248 = vsel %vm229, %v247, %v243
    %v249 = vlaneseq
    %v250 = vshrl.u32 %v249, 7
    %v251 = vsub.s32 %v186, %v250
    %v252 = vrot.slane %v157, %v251
    %v253 = vlaneseq
    %v254 = vshrl.u32 %v253, 7
    %v255 = vsub.s32 %v224, %v254
    %v256 = vrot.slane %v160, %v255
    %v257 = vsel %vm229, %v256, %v252
    %v258 = vlaneseq
    %v259 = vshrl.u32 %v258, 7
    %v260 = vsub.s32 %v186, %v259
    %v261 = vrot.slane %v163, %v260
    %v262 = vlaneseq
    %v263 = vshrl.u32 %v262, 7
    %v264 = vsub.s32 %v224, %v263
    %v265 = vrot.slane %v166, %v264
    %v266 = vsel %vm229, %v265, %v261
    %v267 = vlaneseq
    %v268 = vshrl.u32 %v267, 7
    %v269 = vsub.s32 %v186, %v268
    %v270 = vrot.slane %v169, %v269
    %v271 = vlaneseq
    %v272 = vshrl.u32 %v271, 7
    %v273 = vsub.s32 %v224, %v272
    %v274 = vrot.slane %v172, %v273
    %v275 = vsel %vm229, %v274, %v270
    %v276 = vlaneseq
    %v277 = vshrl.u32 %v276, 7
    %v278 = vsub.s32 %v186, %v277
    %v279 = vrot.slane %v175, %v278
    %v280 = vlaneseq
    %v281 = vshrl.u32 %v280, 7
    %v282 = vsub.s32 %v224, %v281
    %v283 = vrot.slane %v178, %v282
    %v284 = vsel %vm229, %v283, %v279
    %v285 = vlaneseq
    %v286 = vshrl.u32 %v285, 7
    %v287 = vsub.s32 %v186, %v286
    %v288 = vrot.slane %v181, %v287
    %v289 = vlaneseq
    %v290 = vshrl.u32 %v289, 7
    %v291 = vsub.s32 %v224, %v290
    %v292 = vrot.slane %v184, %v291
    %v293 = vsel %vm229, %v292, %v288
    %vm294 = vcmask 1041409
    %v295 = vsel %vm294, %v239, %v230
    %vm296 = vcmask 1042434
    %v297 = vsel %vm296, %v248, %v295
    %vm298 = vcmask 1043459
    %v299 = vsel %vm298, %v257, %v297
    %vm300 = vcmask 1044484
    %v301 = vsel %vm300, %v266, %v299
    %vm302 = vcmask 1045509
    %v303 = vsel %vm302, %v275, %v301
    %vm304 = vcmask 1046534
    %v305 = vsel %vm304, %v284, %v303
    %vm306 = vcmask 1047559
    %v307 = vsel %vm306, %v293, %v305
    %v325 = vlaneseq
    %v326 = vshrl.u32 %v325, 7
    %v327 = vsub.s32 %v186, %v326
    %v328 = vrot.slane %v188, %v327
    %v329 = vlaneseq
    %v330 = vshrl.u32 %v329, 7
    %v331 = vsub.s32 %v224, %v330
    %v332 = vrot.slane %v189, %v331
    %v333 = vsel %vm229, %v332, %v328
    %v334 = vlaneseq
    %v335 = vshrl.u32 %v334, 7
    %v336 = vsub.s32 %v186, %v335
    %v337 = vrot.slane %v190, %v336
    %v338 = vlaneseq
    %v339 = vshrl.u32 %v338, 7
    %v340 = vsub.s32 %v224, %v339
    %v341 = vrot.slane %v191, %v340
    %v342 = vsel %vm229, %v341, %v337
    %v343 = vlaneseq
    %v344 = vshrl.u32 %v343, 7
    %v345 = vsub.s32 %v186, %v344
    %v346 = vrot.slane %v192, %v345
    %v347 = vlaneseq
    %v348 = vshrl.u32 %v347, 7
    %v349 = vsub.s32 %v224, %v348
    %v350 = vrot.slane %v193, %v349
    %v351 = vsel %vm229, %v350, %v346
    %v352 = vlaneseq
    %v353 = vshrl.u32 %v352, 7
    %v354 = vsub.s32 %v186, %v353
    %v355 = vrot.slane %v194, %v354
    %v356 = vlaneseq
    %v357 = vshrl.u32 %v356, 7
    %v358 = vsub.s32 %v224, %v357
    %v359 = vrot.slane %v195, %v358
    %v360 = vsel %vm229, %v359, %v355
    %v361 = vlaneseq
    %v362 = vshrl.u32 %v361, 7
    %v363 = vsub.s32 %v186, %v362
    %v364 = vrot.slane %v196, %v363
    %v365 = vlaneseq
    %v366 = vshrl.u32 %v365, 7
    %v367 = vsub.s32 %v224, %v366
    %v368 = vrot.slane %v197, %v367
    %v369 = vsel %vm229, %v368, %v364
    %v370 = vlaneseq
    %v371 = vshrl.u32 %v370, 7
    %v372 = vsub.s32 %v186, %v371
    %v373 = vrot.slane %v198, %v372
    %v374 = vlaneseq
    %v375 = vshrl.u32 %v374, 7
    %v376 = vsub.s32 %v224, %v375
    %v377 = vrot.slane %v199, %v376
    %v378 = vsel %vm229, %v377, %v373
    %v379 = vlaneseq
    %v380 = vshrl.u32 %v379, 7
    %v381 = vsub.s32 %v186, %v380
    %v382 = vrot.slane %v200, %v381
    %v383 = vlaneseq
    %v384 = vshrl.u32 %v383, 7
    %v385 = vsub.s32 %v224, %v384
    %v386 = vrot.slane %v201, %v385
    %v387 = vsel %vm229, %v386, %v382
    %v388 = vlaneseq
    %v389 = vshrl.u32 %v388, 7
    %v390 = vsub.s32 %v186, %v389
    %v391 = vrot.slane %v202, %v390
    %v392 = vlaneseq
    %v393 = vshrl.u32 %v392, 7
    %v394 = vsub.s32 %v224, %v393
    %v395 = vrot.slane %v203, %v394
    %v396 = vsel %vm229, %v395, %v391
    %v397 = vsel %vm294, %v342, %v333
    %v398 = vsel %vm296, %v351, %v397
    %v399 = vsel %vm298, %v360, %v398
    %v400 = vsel %vm300, %v369, %v399
    %v401 = vsel %vm302, %v378, %v400
    %v402 = vsel %vm304, %v387, %v401
    %v403 = vsel %vm306, %v396, %v402
    %v405 = vsel %vm187, %v307, %v403
    %v406 = vmin.f32 %v405, 0.0
    %v407 = vand.u32 2147483647, %v405
    %v408 = vsub.f32 0.0, %v407
    %v409 = vmul.f32 %v408, 1.442695
    %v410 = vpow.pop %v409
    %v411 = vadd.f32 %v410, 1.0
    %v412 = vlog2.pop %v411
    %v413 = vmul.f32 %v412, 0.6931472
    %v414 = vmul.f32 -0.5, %v410
    %v415 = vadd.f32 %v414, 1.0
    %v416 = vmul.f32 %v415, %v410
    %v417 = vand.u32 2147483647, %v410
    %vm418 = vcmp.lt.f32.partialorder %v417, 0.0004427343
    %v419 = vsel %vm418, %v416, %v413
    %v420 = vsub.f32 %v406, %v419
    %v421 = vlaneseq
    %v422 = vshrl.u32 %v421, 7
    %s423 = smul.u32 0, 8
    %v424 = vstv %s423
    %v425 = vadd.s32 %v422, %v424
    %vm426 = vcmp.lt.s32.totalorder %v425, 2
    %v427 = vsel %vm426, %v420, 0.0
    %vm428 = vcmask 97280
    %v429 = vsel %vm428, %v427, 0.0
    %430 = vadd.xlane.f32.xlu0 %v429
    %v431 = vpop.xlane.xlu0 %430
    %v432 = vrot.slane %v431, 4
    %v433 = vadd.f32 %v431, %v432
    %v434 = vrot.slane %v433, 2
    %v435 = vadd.f32 %v433, %v434
    %v436 = vrot.slane %v435, 1
    %v437 = vadd.f32 %v435, %v436
    %vm438 = vcmask 0
    %439 = vst.msk [vmem:[#allocation2] sm:$0x1] %vm438, %v437
    // Predicated region
    $region10: #{tpu_custom_call.1} parent=1 // pred_check
      _
    $region11: #{tpu_custom_call.1} parent=1 // pred_check_branch
      %441 = sbr.rel (0) target = $region13
    $region12: #{tpu_custom_call.1} parent=1 // pred_region
      %s443 = ssub.s32 16, 16
      %444 = vsyncadd [#allocation3], %s443
      %s446 = sshll.u32 [#allocation2], 4
      %s447 = int_to_ptr.vmem [resolvable:$true] %s446
      %449 = dma.vmem_to_hbm [thread:$0]  %s447, 16, %s2, [#allocation3]
    $region13: #{tpu_custom_call.1} parent=1 // pred_fallthru
      _
    // Predicated region
    $region14: #{tpu_custom_call.1} parent=1 // pred_check
      _
    $region15: #{tpu_custom_call.1} parent=1 // pred_check_branch
      %451 = sbr.rel (0) target = $region17
    $region16: #{tpu_custom_call.1} parent=1 // pred_region
      %452 = dma.done [#allocation3], 16
    $region17: #{tpu_custom_call.1} parent=1 // pred_fallthru
      _
    %453 = vsyncpa [#allocation3], 1

</llo_original>
